<compile_context>
chip_gen: v5e
topology: v5e:2x2
jax: 0.10.0
libtpu: 0.0.40
codegen_flags: <defaults>
</compile_context>

<pallas_src>
import functools

import jax
import jax.numpy as jnp
from jax.experimental import pallas as pl
from jax.experimental.pallas import tpu as pltpu

# ---------------- config (small, consistent with the module) ----------------
HIDDEN = 64
NUM_HEADS = 4
NUM_KV_HEADS = 2
HEAD_DIM = HIDDEN // NUM_HEADS            # 16
GROUP = NUM_HEADS // NUM_KV_HEADS         # 2 q heads per kv head
Q_SIZE = NUM_HEADS * HEAD_DIM             # 64
KV_SIZE = NUM_KV_HEADS * HEAD_DIM         # 32
QKV_WIDTH = Q_SIZE + 2 * KV_SIZE          # 128 (lane-dense fused qkv slab)
INTERMEDIATE = 128
SEQ = 8
EPS = 1e-5
ROPE_THETA = 10000.0
SCALE = HEAD_DIM ** -0.5                  # 0.25, exact power of two


# ------------------------------ fused kernel ---------------------------------
def _layer_kernel(xres_ref, cs_ref, ln_w_ref, qkv_w_ref, o_w_ref,
                  gu_w_ref, down_w_ref, out_ref, *, has_residual):
    T = xres_ref.shape[0]

    # ---- (residual add +) input RMSNorm, f32 ----
    xr = xres_ref[...].astype(jnp.float32)
    x = (xr[:, :HIDDEN] + xr[:, HIDDEN:]) if has_residual else xr
    residual = x
    h = x * jax.lax.rsqrt(jnp.mean(x * x, axis=-1, keepdims=True) + EPS)
    h = h * ln_w_ref[0:1, :]

    # ---- fused QKV projection (bf16 operands, f32 accumulation) ----
    # head_dim**-0.5 is pre-folded into the q columns of qkv_w.
    qkv = jnp.dot(h.astype(jnp.bfloat16), qkv_w_ref[...],
                  preferred_element_type=jnp.float32)              # [T, 128]

    # ---- neox RoPE on the whole lane-dense qkv slab ----
    # rotate_half within each 16-lane head = select between two full-slab XLU
    # rolls (exact f32).  The v lanes see cos=1 / sin=0, so they pass through.
    half = HEAD_DIM // 2
    lane = jax.lax.broadcasted_iota(jnp.int32, qkv.shape, 1)
    second_half = (lane % HEAD_DIM) >= half
    rot = jnp.where(second_half,
                    pltpu.roll(qkv, half, axis=1),                 # x1 -> 2nd half
                    -pltpu.roll(qkv, QKV_WIDTH - half, axis=1))    # -x2 -> 1st half
    cs = cs_ref[...]                                               # [T, 256] cos||sin
    roped = qkv * cs[:, :QKV_WIDTH] + rot * cs[:, QKV_WIDTH:]
    q = roped[:, :Q_SIZE]
    k = roped[:, Q_SIZE:Q_SIZE + KV_SIZE]
    v = roped[:, Q_SIZE + KV_SIZE:]                                # exact passthrough

    # ---- causal GQA attention ----
    # GROUP q heads sharing a kv head are stacked along sublanes: one QK^T and
    # one PV matmul per kv head.  The o-projection is accumulated per q head
    # directly onto the residual (no lane concat, no separate residual add).
    rows = jax.lax.broadcasted_iota(jnp.int32, (GROUP * T, T), 0) % T
    cols = jax.lax.broadcasted_iota(jnp.int32, (GROUP * T, T), 1)
    causal = rows >= cols

    h2 = residual
    for g in range(NUM_KV_HEADS):
        q_stack = jnp.concatenate(
            [q[:, (g * GROUP + j) * HEAD_DIM:(g * GROUP + j + 1) * HEAD_DIM]
             for j in range(GROUP)], axis=0).astype(jnp.bfloat16)  # [G*T, D]
        kg = k[:, g * HEAD_DIM:(g + 1) * HEAD_DIM].astype(jnp.bfloat16)
        vg = v[:, g * HEAD_DIM:(g + 1) * HEAD_DIM].astype(jnp.bfloat16)
        s = jax.lax.dot_general(q_stack, kg, (((1,), (1,)), ((), ())),
                                preferred_element_type=jnp.float32)  # [G*T, T]
        s = jnp.where(causal, s, -1e30)
        p = jnp.exp(s - jnp.max(s, axis=-1, keepdims=True))
        p = p * pl.reciprocal(jnp.sum(p, axis=-1, keepdims=True), approx=True)
        o = jnp.dot(p.astype(jnp.bfloat16), vg,
                    preferred_element_type=jnp.float32)              # [G*T, D]
        for j in range(GROUP):
            hh = g * GROUP + j
            h2 = h2 + jnp.dot(
                o[j * T:(j + 1) * T, :].astype(jnp.bfloat16),
                o_w_ref[hh * HEAD_DIM:(hh + 1) * HEAD_DIM, :],
                preferred_element_type=jnp.float32)

    # ---- pre-FF RMSNorm (h2 already holds o_proj(attn) + residual) ----
    x2 = h2
    h3 = x2 * jax.lax.rsqrt(jnp.mean(x2 * x2, axis=-1, keepdims=True) + EPS)
    h3 = h3 * ln_w_ref[1:2, :]

    # ---- MLP: gate_up -> SiLU * mul -> down ----
    gu = jnp.dot(h3.astype(jnp.bfloat16), gu_w_ref[...],
                 preferred_element_type=jnp.float32)                 # [T, 2I]
    gate = gu[:, :INTERMEDIATE]
    up = gu[:, INTERMEDIATE:]
    act = gate * jax.nn.sigmoid(gate) * up
    mlp = jnp.dot(act.astype(jnp.bfloat16), down_w_ref[...],
                  preferred_element_type=jnp.float32)                # [T, H]

    # single lane-dense [T, 2H] store: hidden_out || residual_out
    out_ref[...] = jnp.concatenate([mlp, x2], axis=-1).astype(out_ref.dtype)


# ------------------------------ wrapper ---------------------------------------
def _resident_spec(shape):
    zeros = (0,) * len(shape)
    return pl.BlockSpec(shape, lambda b: zeros)


def _fused_layer(xres, cossin, params, *, has_residual):
    B, T, in_w = xres.shape
    kernel = functools.partial(_layer_kernel, has_residual=has_residual)
    return pl.pallas_call(
        kernel,
        grid=(B,),
        out_shape=jax.ShapeDtypeStruct((B, T, 2 * HIDDEN), jnp.float32),
        in_specs=[
            pl.BlockSpec((None, T, in_w), lambda b: (b, 0, 0)),      # activations (tiled)
            _resident_spec(cossin.shape),                            # rope cos||sin
            _resident_spec(params["ln_w"].shape),                    # [2, H] both norms
            _resident_spec(params["qkv_w"].shape),
            _resident_spec(params["o_w"].shape),
            _resident_spec(params["gate_up_w"].shape),
            _resident_spec(params["down_w"].shape),
        ],
        out_specs=pl.BlockSpec((None, T, 2 * HIDDEN), lambda b: (b, 0, 0)),
        compiler_params=pltpu.CompilerParams(
            dimension_semantics=("parallel",)),        # both TCs on v7x
    )(xres, cossin, params["ln_w"], params["qkv_w"], params["o_w"],
      params["gate_up_w"], params["down_w"])


@jax.jit
def bamba_attention_decoder_layer(hidden_states, residual, cossin, params):
    """Mirrors BambaAttentionDecoderLayer.forward -> (hidden_out, residual_out)."""
    if residual is None:
        out = _fused_layer(hidden_states, cossin, params, has_residual=False)
    else:
        xres = jnp.concatenate([hidden_states, residual], axis=-1)   # [B, T, 2H]
        out = _fused_layer(xres, cossin, params, has_residual=True)
    return out[..., :HIDDEN], out[..., HIDDEN:]


# --------------------- rope table (computed once, shared) ---------------------
def make_rope_cossin(positions):
    """Packed [T, 2*QKV_WIDTH] table [cos | sin], laid out lane-for-lane against
    the fused qkv slab.  cos=1 / sin=0 over the v lanes so one multiply-add
    ropes q and k and passes v through exactly.  Built once, shared by layers."""
    t = positions.shape[0]
    inv_freq = 1.0 / (ROPE_THETA ** (
        jnp.arange(0, HEAD_DIM, 2, dtype=jnp.float32) / HEAD_DIM))
    ang = positions.astype(jnp.float32)[:, None] * inv_freq[None, :]   # [T, D/2]
    cos = jnp.concatenate([jnp.cos(ang), jnp.cos(ang)], axis=-1)       # [T, D] neox
    sin = jnp.concatenate([jnp.sin(ang), jnp.sin(ang)], axis=-1)
    n_rope_heads = NUM_HEADS + NUM_KV_HEADS
    cos_qk = jnp.tile(cos, (1, n_rope_heads))                          # [T, 96]
    sin_qk = jnp.tile(sin, (1, n_rope_heads))
    cos_full = jnp.concatenate([cos_qk, jnp.ones((t, KV_SIZE), jnp.float32)], -1)
    sin_full = jnp.concatenate([sin_qk, jnp.zeros((t, KV_SIZE), jnp.float32)], -1)
    return jnp.concatenate([cos_full, sin_full], axis=-1)              # [T, 256]


# ------------------------------- params ---------------------------------------
def init_raw_params(key):
    ks = jax.random.split(key, 6)
    w = 0.05
    return {
        "input_ln_w": 1.0 + 0.1 * jax.random.normal(ks[0], (HIDDEN,), jnp.float32),
        "pre_ff_ln_w": 1.0 + 0.1 * jax.random.normal(ks[1], (HIDDEN,), jnp.float32),
        # matmul weights stored [in, out]
        "qkv_w": w * jax.random.normal(ks[2], (HIDDEN, QKV_WIDTH), jnp.float32),
        "o_w": w * jax.random.normal(ks[3], (Q_SIZE, HIDDEN), jnp.float32),
        "gate_up_w": w * jax.random.normal(ks[4], (HIDDEN, 2 * INTERMEDIATE), jnp.float32),
        "down_w": w * jax.random.normal(ks[5], (INTERMEDIATE, HIDDEN), jnp.float32),
    }


def prep_params(raw):
    """Kernel-ready weights: bf16 matmul operands, attention scale folded into
    the q columns (exact: 2^-2), both layernorm weights packed into one array."""
    qkv_w = raw["qkv_w"].at[:, :Q_SIZE].multiply(SCALE)
    return {
        "ln_w": jnp.stack([raw["input_ln_w"], raw["pre_ff_ln_w"]], axis=0),  # [2, H]
        "qkv_w": qkv_w.astype(jnp.bfloat16),
        "o_w": raw["o_w"].astype(jnp.bfloat16),
        "gate_up_w": raw["gate_up_w"].astype(jnp.bfloat16),
        "down_w": raw["down_w"].astype(jnp.bfloat16),
    }


# ----------------------- pure-JAX reference (for checking) --------------------
def _reference_layer(hidden, residual, cossin, params):
    """Pure-JAX reference of the torch forward with the same precision policy
    (bf16 matmul operands / f32 accumulation; scale pre-folded into qkv_w)."""
    f32, bf16 = jnp.float32, jnp.bfloat16
    B, T, _ = hidden.shape
    x = hidden.astype(f32) if residual is None else hidden.astype(f32) + residual.astype(f32)
    res = x
    h = x * jax.lax.rsqrt(jnp.mean(x * x, -1, keepdims=True) + EPS) * params["ln_w"][0]
    qkv = jnp.einsum("btk,kn->btn", h.astype(bf16), params["qkv_w"],
                     preferred_element_type=f32)
    q = qkv[..., :Q_SIZE].reshape(B, T, NUM_HEADS, HEAD_DIM)
    k = qkv[..., Q_SIZE:Q_SIZE + KV_SIZE].reshape(B, T, NUM_KV_HEADS, HEAD_DIM)
    v = qkv[..., Q_SIZE + KV_SIZE:].reshape(B, T, NUM_KV_HEADS, HEAD_DIM)
    cos = cossin[:, :HEAD_DIM][None, :, None, :]
    sin = cossin[:, QKV_WIDTH:QKV_WIDTH + HEAD_DIM][None, :, None, :]

    def rope(t):
        t1, t2 = t[..., :HEAD_DIM // 2], t[..., HEAD_DIM // 2:]
        return t * cos + jnp.concatenate([-t2, t1], axis=-1) * sin

    q, k = rope(q), rope(k)
    k = jnp.repeat(k, GROUP, axis=2)
    v = jnp.repeat(v, GROUP, axis=2)
    s = jnp.einsum("bqhd,bkhd->bhqk", q.astype(bf16), k.astype(bf16),
                   preferred_element_type=f32)
    mask = jnp.tril(jnp.ones((T, T), bool))
    s = jnp.where(mask[None, None], s, -1e30)
    p = jax.nn.softmax(s, axis=-1)
    attn = jnp.einsum("bhqk,bkhd->bqhd", p.astype(bf16), v.astype(bf16),
                      preferred_element_type=f32).reshape(B, T, Q_SIZE)
    h2 = jnp.einsum("btk,kn->btn", attn.astype(bf16), params["o_w"],
                    preferred_element_type=f32)
    x2 = h2 + res
    h3 = x2 * jax.lax.rsqrt(jnp.mean(x2 * x2, -1, keepdims=True) + EPS) * params["ln_w"][1]
    gu = jnp.einsum("btk,kn->btn", h3.astype(bf16), params["gate_up_w"],
                    preferred_element_type=f32)
    act = jax.nn.silu(gu[..., :INTERMEDIATE]) * gu[..., INTERMEDIATE:]
    mlp = jnp.einsum("btk,kn->btn", act.astype(bf16), params["down_w"],
                     preferred_element_type=f32)
    return mlp, x2


# ----------------------------------- main --------------------------------------
if __name__ == "__main__":
    key = jax.random.PRNGKey(0)
    kp, kx = jax.random.split(key)
    raw = init_raw_params(kp)
    params = prep_params(raw)

    B, T = 4, SEQ
    positions = jnp.arange(T, dtype=jnp.int32)
    cossin = make_rope_cossin(positions)                       # shared by all layers
    hidden = jax.random.normal(kx, (B, T, HIDDEN), jnp.float32)

    # layer 1: residual-is-None branch
    h1, r1 = bamba_attention_decoder_layer(hidden, None, cossin, params)
    # layer 2: fused add+norm residual branch (stacked decoder layers)
    h2, r2 = bamba_attention_decoder_layer(h1, r1, cossin, params)
    h1, r1, h2, r2 = jax.block_until_ready((h1, r1, h2, r2))

    # numerical check vs. a pure-JAX reference with the same precision policy
    ref_h1, ref_r1 = _reference_layer(hidden, None, cossin, params)
    ref_h2, ref_r2 = _reference_layer(h1, r1, cossin, params)
    for name, got, want in (("h1", h1, ref_h1), ("r1", r1, ref_r1),
                            ("h2", h2, ref_h2), ("r2", r2, ref_r2)):
        err = float(jnp.max(jnp.abs(got - want)))
        assert err < 5e-3, f"{name}: max abs err {err}"

    assert h1.shape == (B, T, HIDDEN) and r1.shape == (B, T, HIDDEN)
    assert h2.shape == (B, T, HIDDEN) and r2.shape == (B, T, HIDDEN)
    assert bool(jnp.all(jnp.isfinite(h2))) and bool(jnp.all(jnp.isfinite(r2)))
    print("KERNEL_OK")
</pallas_src>

<mosaic_0001>
module attributes {stable_mosaic.version = 11 : i64} {
  func.func @_layer_kernel(%arg0: i32, %arg1: memref<1x8x64xf32, #tpu.memory_space<vmem>>, %arg2: memref<8x256xf32, #tpu.memory_space<vmem>>, %arg3: memref<2x64xf32, #tpu.memory_space<vmem>>, %arg4: memref<64x128xbf16, #tpu.memory_space<vmem>>, %arg5: memref<64x64xbf16, #tpu.memory_space<vmem>>, %arg6: memref<64x256xbf16, #tpu.memory_space<vmem>>, %arg7: memref<128x64xbf16, #tpu.memory_space<vmem>>, %arg8: memref<1x8x128xf32, #tpu.memory_space<vmem>>) attributes {dimension_semantics = [#tpu.dimension_semantics<parallel>], iteration_bounds = array<i64: 4>, scalar_prefetch = 0 : i64, scratch_operands = 0 : i64, tpu.core_type = #tpu.core_type<tc>, window_params = [{transform_indices = @transform_0, window_bounds = array<i64: 1, 8, 64>}, {pipeline_mode = #tpu.pipeline_mode<synchronous>, transform_indices = @transform_1, window_bounds = array<i64: 8, 256>}, {pipeline_mode = #tpu.pipeline_mode<synchronous>, transform_indices = @transform_2, window_bounds = array<i64: 2, 64>}, {pipeline_mode = #tpu.pipeline_mode<synchronous>, transform_indices = @transform_3, window_bounds = array<i64: 64, 128>}, {pipeline_mode = #tpu.pipeline_mode<synchronous>, transform_indices = @transform_4, window_bounds = array<i64: 64, 64>}, {pipeline_mode = #tpu.pipeline_mode<synchronous>, transform_indices = @transform_5, window_bounds = array<i64: 64, 256>}, {pipeline_mode = #tpu.pipeline_mode<synchronous>, transform_indices = @transform_6, window_bounds = array<i64: 128, 64>}, {transform_indices = @transform_7, window_bounds = array<i64: 1, 8, 128>}]} {
    %c0 = arith.constant 0 : index
    %c0_0 = arith.constant 0 : index
    %c0_1 = arith.constant 0 : index
    %0 = vector.load %arg1[%c0, %c0_0, %c0_1] : memref<1x8x64xf32, #tpu.memory_space<vmem>>, vector<1x8x64xf32>
    %1 = vector.shape_cast %0 : vector<1x8x64xf32> to vector<8x64xf32>
    %2 = arith.mulf %1, %1 : vector<8x64xf32>
    %cst = arith.constant dense<0.000000e+00> : vector<8xf32>
    %3 = vector.multi_reduction <add>, %2, %cst [1] : vector<8x64xf32> to vector<8xf32>
    %4 = vector.shape_cast %3 : vector<8xf32> to vector<8x1xf32>
    %cst_2 = arith.constant 6.400000e+01 : f32
    %5 = vector.broadcast %cst_2 : f32 to vector<8x1xf32>
    %6 = arith.divf %4, %5 : vector<8x1xf32>
    %cst_3 = arith.constant 9.99999974E-6 : f32
    %7 = vector.broadcast %cst_3 : f32 to vector<8x1xf32>
    %8 = arith.addf %6, %7 : vector<8x1xf32>
    %9 = math.rsqrt %8 : vector<8x1xf32>
    %10 = vector.broadcast %9 : vector<8x1xf32> to vector<8x64xf32>
    %11 = arith.mulf %1, %10 : vector<8x64xf32>
    %c0_4 = arith.constant 0 : index
    %c0_5 = arith.constant 0 : index
    %12 = vector.load %arg3[%c0_4, %c0_5] : memref<2x64xf32, #tpu.memory_space<vmem>>, vector<1x64xf32>
    %13 = vector.broadcast %12 : vector<1x64xf32> to vector<8x64xf32>
    %14 = arith.mulf %11, %13 : vector<8x64xf32>
    %15 = arith.truncf %14 : vector<8x64xf32> to vector<8x64xbf16>
    %c0_6 = arith.constant 0 : index
    %c0_7 = arith.constant 0 : index
    %16 = vector.load %arg4[%c0_6, %c0_7] : memref<64x128xbf16, #tpu.memory_space<vmem>>, vector<64x128xbf16>
    %cst_8 = arith.constant dense<0.000000e+00> : vector<8x128xf32>
    %17 = tpu.matmul %15, %16, %cst_8 {dimension_numbers = #tpu.dot_dimension_numbers<[1], [0], [0], [1], [0, 0, 1, 1], [], []>} : vector<8x64xbf16>, vector<64x128xbf16>, vector<8x128xf32> -> vector<8x128xf32>
    %18 = tpu.iota {dimensions = array<i32: 1>} : vector<8x128xi32>
    %c16_i32 = arith.constant 16 : i32
    %c0_i32 = arith.constant 0 : i32
    %19 = arith.cmpi eq, %c16_i32, %c0_i32 : i32
    %c1_i32 = arith.constant 1 : i32
    %20 = arith.select %19, %c1_i32, %c16_i32 : i32
    %21 = vector.broadcast %20 : i32 to vector<8x128xi32>
    %22 = arith.remsi %18, %21 : vector<8x128xi32>
    %c0_i32_9 = arith.constant 0 : i32
    %23 = vector.broadcast %c0_i32_9 : i32 to vector<8x128xi32>
    %24 = arith.cmpi ne, %22, %23 : vector<8x128xi32>
    %c0_i32_10 = arith.constant 0 : i32
    %25 = vector.broadcast %c0_i32_10 : i32 to vector<8x128xi32>
    %26 = arith.cmpi slt, %22, %25 : vector<8x128xi32>
    %c0_i32_11 = arith.constant 0 : i32
    %27 = arith.cmpi slt, %20, %c0_i32_11 : i32
    %28 = vector.broadcast %27 : i1 to vector<8x128xi1>
    %29 = vector.broadcast %28 : vector<8x128xi1> to vector<8x128xi1>
    %30 = arith.xori %26, %29 : vector<8x128xi1>
    %31 = arith.andi %30, %24 : vector<8x128xi1>
    %32 = vector.broadcast %20 : i32 to vector<8x128xi32>
    %33 = arith.addi %22, %32 : vector<8x128xi32>
    %34 = arith.select %31, %33, %22 : vector<8x128xi1>, vector<8x128xi32>
    %c8_i32 = arith.constant 8 : i32
    %35 = vector.broadcast %c8_i32 : i32 to vector<8x128xi32>
    %36 = arith.cmpi sge, %34, %35 : vector<8x128xi32>
    %c8_i32_12 = arith.constant 8 : i32
    %37 = tpu.dynamic_rotate %17 by %c8_i32_12 dim 1 : vector<8x128xf32>, i32 -> vector<8x128xf32>
    %c120_i32 = arith.constant 120 : i32
    %38 = tpu.dynamic_rotate %17 by %c120_i32 dim 1 : vector<8x128xf32>, i32 -> vector<8x128xf32>
    %cst_13 = arith.constant 0.000000e+00 : f32
    %39 = vector.broadcast %cst_13 : f32 to vector<8x128xf32>
    %40 = arith.subf %39, %38 : vector<8x128xf32>
    %41 = arith.select %36, %37, %40 : vector<8x128xi1>, vector<8x128xf32>
    %c0_14 = arith.constant 0 : index
    %c0_15 = arith.constant 0 : index
    %42 = vector.load %arg2[%c0_14, %c0_15] : memref<8x256xf32, #tpu.memory_space<vmem>>, vector<8x256xf32>
    %43 = vector.extract_strided_slice %42 {offsets = [0, 0], sizes = [8, 128], strides = [1, 1]} : vector<8x256xf32> to vector<8x128xf32>
    %44 = arith.mulf %17, %43 : vector<8x128xf32>
    %45 = vector.extract_strided_slice %42 {offsets = [0, 128], sizes = [8, 128], strides = [1, 1]} : vector<8x256xf32> to vector<8x128xf32>
    %46 = arith.mulf %41, %45 : vector<8x128xf32>
    %47 = arith.addf %44, %46 : vector<8x128xf32>
    %48 = vector.extract_strided_slice %47 {offsets = [0, 0], sizes = [8, 64], strides = [1, 1]} : vector<8x128xf32> to vector<8x64xf32>
    %49 = vector.extract_strided_slice %47 {offsets = [0, 64], sizes = [8, 32], strides = [1, 1]} : vector<8x128xf32> to vector<8x32xf32>
    %50 = vector.extract_strided_slice %47 {offsets = [0, 96], sizes = [8, 32], strides = [1, 1]} : vector<8x128xf32> to vector<8x32xf32>
    %51 = tpu.iota {dimensions = array<i32: 0>} : vector<16x8xi32>
    %c8_i32_16 = arith.constant 8 : i32
    %c0_i32_17 = arith.constant 0 : i32
    %52 = arith.cmpi eq, %c8_i32_16, %c0_i32_17 : i32
    %c1_i32_18 = arith.constant 1 : i32
    %53 = arith.select %52, %c1_i32_18, %c8_i32_16 : i32
    %54 = vector.broadcast %53 : i32 to vector<16x8xi32>
    %55 = arith.remsi %51, %54 : vector<16x8xi32>
    %c0_i32_19 = arith.constant 0 : i32
    %56 = vector.broadcast %c0_i32_19 : i32 to vector<16x8xi32>
    %57 = arith.cmpi ne, %55, %56 : vector<16x8xi32>
    %c0_i32_20 = arith.constant 0 : i32
    %58 = vector.broadcast %c0_i32_20 : i32 to vector<16x8xi32>
    %59 = arith.cmpi slt, %55, %58 : vector<16x8xi32>
    %c0_i32_21 = arith.constant 0 : i32
    %60 = arith.cmpi slt, %53, %c0_i32_21 : i32
    %61 = vector.broadcast %60 : i1 to vector<16x8xi1>
    %62 = vector.broadcast %61 : vector<16x8xi1> to vector<16x8xi1>
    %63 = arith.xori %59, %62 : vector<16x8xi1>
    %64 = arith.andi %63, %57 : vector<16x8xi1>
    %65 = vector.broadcast %53 : i32 to vector<16x8xi32>
    %66 = arith.addi %55, %65 : vector<16x8xi32>
    %67 = arith.select %64, %66, %55 : vector<16x8xi1>, vector<16x8xi32>
    %68 = tpu.iota {dimensions = array<i32: 1>} : vector<16x8xi32>
    %69 = arith.cmpi sge, %67, %68 : vector<16x8xi32>
    %70 = vector.extract_strided_slice %48 {offsets = [0, 0], sizes = [8, 16], strides = [1, 1]} : vector<8x64xf32> to vector<8x16xf32>
    %71 = vector.extract_strided_slice %48 {offsets = [0, 16], sizes = [8, 16], strides = [1, 1]} : vector<8x64xf32> to vector<8x16xf32>
    %72 = tpu.concatenate %70, %71 in 0 : vector<8x16xf32>, vector<8x16xf32> -> vector<16x16xf32>
    %73 = arith.truncf %72 : vector<16x16xf32> to vector<16x16xbf16>
    %74 = vector.extract_strided_slice %49 {offsets = [0, 0], sizes = [8, 16], strides = [1, 1]} : vector<8x32xf32> to vector<8x16xf32>
    %75 = arith.truncf %74 : vector<8x16xf32> to vector<8x16xbf16>
    %76 = vector.extract_strided_slice %50 {offsets = [0, 0], sizes = [8, 16], strides = [1, 1]} : vector<8x32xf32> to vector<8x16xf32>
    %77 = arith.truncf %76 : vector<8x16xf32> to vector<8x16xbf16>
    %cst_22 = arith.constant dense<0.000000e+00> : vector<16x8xf32>
    %78 = tpu.matmul %73, %75, %cst_22 {dimension_numbers = #tpu.dot_dimension_numbers<[1], [1], [0], [0], [0, 0, 1, 0], [], []>} : vector<16x16xbf16>, vector<8x16xbf16>, vector<16x8xf32> -> vector<16x8xf32>
    %cst_23 = arith.constant -1.000000e+30 : f32
    %79 = vector.broadcast %cst_23 : f32 to vector<16x8xf32>
    %80 = arith.select %69, %78, %79 : vector<16x8xi1>, vector<16x8xf32>
    %cst_24 = arith.constant dense<0xFF800000> : vector<16xf32>
    %81 = vector.multi_reduction <maximumf>, %80, %cst_24 [1] : vector<16x8xf32> to vector<16xf32>
    %82 = vector.shape_cast %81 : vector<16xf32> to vector<16x1xf32>
    %83 = vector.broadcast %82 : vector<16x1xf32> to vector<16x8xf32>
    %84 = arith.subf %80, %83 : vector<16x8xf32>
    %85 = math.exp %84 : vector<16x8xf32>
    %cst_25 = arith.constant dense<0.000000e+00> : vector<16xf32>
    %86 = vector.multi_reduction <add>, %85, %cst_25 [1] : vector<16x8xf32> to vector<16xf32>
    %87 = vector.shape_cast %86 : vector<16xf32> to vector<16x1xf32>
    %88 = tpu.reciprocal %87 {approx = true} : vector<16x1xf32> -> vector<16x1xf32>
    %89 = vector.broadcast %88 : vector<16x1xf32> to vector<16x8xf32>
    %90 = arith.mulf %85, %89 : vector<16x8xf32>
    %91 = arith.truncf %90 : vector<16x8xf32> to vector<16x8xbf16>
    %cst_26 = arith.constant dense<0.000000e+00> : vector<16x16xf32>
    %92 = tpu.matmul %91, %77, %cst_26 {dimension_numbers = #tpu.dot_dimension_numbers<[1], [0], [0], [1], [0, 0, 1, 1], [], []>} : vector<16x8xbf16>, vector<8x16xbf16>, vector<16x16xf32> -> vector<16x16xf32>
    %93 = vector.extract_strided_slice %92 {offsets = [0, 0], sizes = [8, 16], strides = [1, 1]} : vector<16x16xf32> to vector<8x16xf32>
    %94 = arith.truncf %93 : vector<8x16xf32> to vector<8x16xbf16>
    %c0_27 = arith.constant 0 : index
    %c0_28 = arith.constant 0 : index
    %95 = vector.load %arg5[%c0_27, %c0_28] : memref<64x64xbf16, #tpu.memory_space<vmem>>, vector<16x64xbf16>
    %cst_29 = arith.constant dense<0.000000e+00> : vector<8x64xf32>
    %96 = tpu.matmul %94, %95, %cst_29 {dimension_numbers = #tpu.dot_dimension_numbers<[1], [0], [0], [1], [0, 0, 1, 1], [], []>} : vector<8x16xbf16>, vector<16x64xbf16>, vector<8x64xf32> -> vector<8x64xf32>
    %97 = arith.addf %1, %96 : vector<8x64xf32>
    %98 = vector.extract_strided_slice %92 {offsets = [8, 0], sizes = [8, 16], strides = [1, 1]} : vector<16x16xf32> to vector<8x16xf32>
    %99 = arith.truncf %98 : vector<8x16xf32> to vector<8x16xbf16>
    %c16 = arith.constant 16 : index
    %c0_30 = arith.constant 0 : index
    %100 = vector.load %arg5[%c16, %c0_30] : memref<64x64xbf16, #tpu.memory_space<vmem>>, vector<16x64xbf16>
    %cst_31 = arith.constant dense<0.000000e+00> : vector<8x64xf32>
    %101 = tpu.matmul %99, %100, %cst_31 {dimension_numbers = #tpu.dot_dimension_numbers<[1], [0], [0], [1], [0, 0, 1, 1], [], []>} : vector<8x16xbf16>, vector<16x64xbf16>, vector<8x64xf32> -> vector<8x64xf32>
    %102 = arith.addf %97, %101 : vector<8x64xf32>
    %103 = vector.extract_strided_slice %48 {offsets = [0, 32], sizes = [8, 16], strides = [1, 1]} : vector<8x64xf32> to vector<8x16xf32>
    %104 = vector.extract_strided_slice %48 {offsets = [0, 48], sizes = [8, 16], strides = [1, 1]} : vector<8x64xf32> to vector<8x16xf32>
    %105 = tpu.concatenate %103, %104 in 0 : vector<8x16xf32>, vector<8x16xf32> -> vector<16x16xf32>
    %106 = arith.truncf %105 : vector<16x16xf32> to vector<16x16xbf16>
    %107 = vector.extract_strided_slice %49 {offsets = [0, 16], sizes = [8, 16], strides = [1, 1]} : vector<8x32xf32> to vector<8x16xf32>
    %108 = arith.truncf %107 : vector<8x16xf32> to vector<8x16xbf16>
    %109 = vector.extract_strided_slice %50 {offsets = [0, 16], sizes = [8, 16], strides = [1, 1]} : vector<8x32xf32> to vector<8x16xf32>
    %110 = arith.truncf %109 : vector<8x16xf32> to vector<8x16xbf16>
    %cst_32 = arith.constant dense<0.000000e+00> : vector<16x8xf32>
    %111 = tpu.matmul %106, %108, %cst_32 {dimension_numbers = #tpu.dot_dimension_numbers<[1], [1], [0], [0], [0, 0, 1, 0], [], []>} : vector<16x16xbf16>, vector<8x16xbf16>, vector<16x8xf32> -> vector<16x8xf32>
    %cst_33 = arith.constant -1.000000e+30 : f32
    %112 = vector.broadcast %cst_33 : f32 to vector<16x8xf32>
    %113 = arith.select %69, %111, %112 : vector<16x8xi1>, vector<16x8xf32>
    %cst_34 = arith.constant dense<0xFF800000> : vector<16xf32>
    %114 = vector.multi_reduction <maximumf>, %113, %cst_34 [1] : vector<16x8xf32> to vector<16xf32>
    %115 = vector.shape_cast %114 : vector<16xf32> to vector<16x1xf32>
    %116 = vector.broadcast %115 : vector<16x1xf32> to vector<16x8xf32>
    %117 = arith.subf %113, %116 : vector<16x8xf32>
    %118 = math.exp %117 : vector<16x8xf32>
    %cst_35 = arith.constant dense<0.000000e+00> : vector<16xf32>
    %119 = vector.multi_reduction <add>, %118, %cst_35 [1] : vector<16x8xf32> to vector<16xf32>
    %120 = vector.shape_cast %119 : vector<16xf32> to vector<16x1xf32>
    %121 = tpu.reciprocal %120 {approx = true} : vector<16x1xf32> -> vector<16x1xf32>
    %122 = vector.broadcast %121 : vector<16x1xf32> to vector<16x8xf32>
    %123 = arith.mulf %118, %122 : vector<16x8xf32>
    %124 = arith.truncf %123 : vector<16x8xf32> to vector<16x8xbf16>
    %cst_36 = arith.constant dense<0.000000e+00> : vector<16x16xf32>
    %125 = tpu.matmul %124, %110, %cst_36 {dimension_numbers = #tpu.dot_dimension_numbers<[1], [0], [0], [1], [0, 0, 1, 1], [], []>} : vector<16x8xbf16>, vector<8x16xbf16>, vector<16x16xf32> -> vector<16x16xf32>
    %126 = vector.extract_strided_slice %125 {offsets = [0, 0], sizes = [8, 16], strides = [1, 1]} : vector<16x16xf32> to vector<8x16xf32>
    %127 = arith.truncf %126 : vector<8x16xf32> to vector<8x16xbf16>
    %c32 = arith.constant 32 : index
    %c0_37 = arith.constant 0 : index
    %128 = vector.load %arg5[%c32, %c0_37] : memref<64x64xbf16, #tpu.memory_space<vmem>>, vector<16x64xbf16>
    %cst_38 = arith.constant dense<0.000000e+00> : vector<8x64xf32>
    %129 = tpu.matmul %127, %128, %cst_38 {dimension_numbers = #tpu.dot_dimension_numbers<[1], [0], [0], [1], [0, 0, 1, 1], [], []>} : vector<8x16xbf16>, vector<16x64xbf16>, vector<8x64xf32> -> vector<8x64xf32>
    %130 = arith.addf %102, %129 : vector<8x64xf32>
    %131 = vector.extract_strided_slice %125 {offsets = [8, 0], sizes = [8, 16], strides = [1, 1]} : vector<16x16xf32> to vector<8x16xf32>
    %132 = arith.truncf %131 : vector<8x16xf32> to vector<8x16xbf16>
    %c48 = arith.constant 48 : index
    %c0_39 = arith.constant 0 : index
    %133 = vector.load %arg5[%c48, %c0_39] : memref<64x64xbf16, #tpu.memory_space<vmem>>, vector<16x64xbf16>
    %cst_40 = arith.constant dense<0.000000e+00> : vector<8x64xf32>
    %134 = tpu.matmul %132, %133, %cst_40 {dimension_numbers = #tpu.dot_dimension_numbers<[1], [0], [0], [1], [0, 0, 1, 1], [], []>} : vector<8x16xbf16>, vector<16x64xbf16>, vector<8x64xf32> -> vector<8x64xf32>
    %135 = arith.addf %130, %134 : vector<8x64xf32>
    %136 = arith.mulf %135, %135 : vector<8x64xf32>
    %cst_41 = arith.constant dense<0.000000e+00> : vector<8xf32>
    %137 = vector.multi_reduction <add>, %136, %cst_41 [1] : vector<8x64xf32> to vector<8xf32>
    %138 = vector.shape_cast %137 : vector<8xf32> to vector<8x1xf32>
    %cst_42 = arith.constant 6.400000e+01 : f32
    %139 = vector.broadcast %cst_42 : f32 to vector<8x1xf32>
    %140 = arith.divf %138, %139 : vector<8x1xf32>
    %cst_43 = arith.constant 9.99999974E-6 : f32
    %141 = vector.broadcast %cst_43 : f32 to vector<8x1xf32>
    %142 = arith.addf %140, %141 : vector<8x1xf32>
    %143 = math.rsqrt %142 : vector<8x1xf32>
    %144 = vector.broadcast %143 : vector<8x1xf32> to vector<8x64xf32>
    %145 = arith.mulf %135, %144 : vector<8x64xf32>
    %c1 = arith.constant 1 : index
    %c0_44 = arith.constant 0 : index
    %146 = vector.load %arg3[%c1, %c0_44] : memref<2x64xf32, #tpu.memory_space<vmem>>, vector<1x64xf32>
    %147 = vector.broadcast %146 : vector<1x64xf32> to vector<8x64xf32>
    %148 = arith.mulf %145, %147 : vector<8x64xf32>
    %149 = arith.truncf %148 : vector<8x64xf32> to vector<8x64xbf16>
    %c0_45 = arith.constant 0 : index
    %c0_46 = arith.constant 0 : index
    %150 = vector.load %arg6[%c0_45, %c0_46] : memref<64x256xbf16, #tpu.memory_space<vmem>>, vector<64x256xbf16>
    %cst_47 = arith.constant dense<0.000000e+00> : vector<8x256xf32>
    %151 = tpu.matmul %149, %150, %cst_47 {dimension_numbers = #tpu.dot_dimension_numbers<[1], [0], [0], [1], [0, 0, 1, 1], [], []>} : vector<8x64xbf16>, vector<64x256xbf16>, vector<8x256xf32> -> vector<8x256xf32>
    %152 = vector.extract_strided_slice %151 {offsets = [0, 0], sizes = [8, 128], strides = [1, 1]} : vector<8x256xf32> to vector<8x128xf32>
    %153 = vector.extract_strided_slice %151 {offsets = [0, 128], sizes = [8, 128], strides = [1, 1]} : vector<8x256xf32> to vector<8x128xf32>
    %154 = arith.negf %152 : vector<8x128xf32>
    %155 = math.exp %154 : vector<8x128xf32>
    %cst_48 = arith.constant 1.000000e+00 : f32
    %156 = vector.broadcast %cst_48 : f32 to vector<8x128xf32>
    %157 = arith.addf %156, %155 : vector<8x128xf32>
    %158 = arith.divf %156, %157 : vector<8x128xf32>
    %159 = arith.mulf %152, %158 : vector<8x128xf32>
    %160 = arith.mulf %159, %153 : vector<8x128xf32>
    %161 = arith.truncf %160 : vector<8x128xf32> to vector<8x128xbf16>
    %c0_49 = arith.constant 0 : index
    %c0_50 = arith.constant 0 : index
    %162 = vector.load %arg7[%c0_49, %c0_50] : memref<128x64xbf16, #tpu.memory_space<vmem>>, vector<128x64xbf16>
    %cst_51 = arith.constant dense<0.000000e+00> : vector<8x64xf32>
    %163 = tpu.matmul %161, %162, %cst_51 {dimension_numbers = #tpu.dot_dimension_numbers<[1], [0], [0], [1], [0, 0, 1, 1], [], []>} : vector<8x128xbf16>, vector<128x64xbf16>, vector<8x64xf32> -> vector<8x64xf32>
    %164 = tpu.concatenate %163, %135 in 1 : vector<8x64xf32>, vector<8x64xf32> -> vector<8x128xf32>
    %c0_52 = arith.constant 0 : index
    %c0_53 = arith.constant 0 : index
    %c0_54 = arith.constant 0 : index
    %165 = vector.load %arg8[%c0_52, %c0_53, %c0_54] : memref<1x8x128xf32, #tpu.memory_space<vmem>>, vector<1x8x128xf32>
    %166 = vector.shape_cast %165 : vector<1x8x128xf32> to vector<8x128xf32>
    %167 = vector.shape_cast %164 : vector<8x128xf32> to vector<1x8x128xf32>
    tpu.vector_store %arg8[%c0_52, %c0_53, %c0_54], %167 {strides = array<i32>} : memref<1x8x128xf32, #tpu.memory_space<vmem>>, vector<1x8x128xf32>,
    return
  }
  func.func @transform_0(%arg0: i32) -> (i32, i32, i32) {
    %c0_i32 = arith.constant 0 : i32
    %c0_i32_0 = arith.constant 0 : i32
    %c0_i32_1 = arith.constant 0 : i32
    return %arg0, %c0_i32, %c0_i32_0 : i32, i32, i32
  }
  func.func @transform_1(%arg0: i32) -> (i32, i32) {
    %c0_i32 = arith.constant 0 : i32
    %c0_i32_0 = arith.constant 0 : i32
    %c0_i32_1 = arith.constant 0 : i32
    return %c0_i32, %c0_i32_0 : i32, i32
  }
  func.func @transform_2(%arg0: i32) -> (i32, i32) {
    %c0_i32 = arith.constant 0 : i32
    %c0_i32_0 = arith.constant 0 : i32
    %c0_i32_1 = arith.constant 0 : i32
    return %c0_i32, %c0_i32_0 : i32, i32
  }
  func.func @transform_3(%arg0: i32) -> (i32, i32) {
    %c0_i32 = arith.constant 0 : i32
    %c0_i32_0 = arith.constant 0 : i32
    %c0_i32_1 = arith.constant 0 : i32
    return %c0_i32, %c0_i32_0 : i32, i32
  }
  func.func @transform_4(%arg0: i32) -> (i32, i32) {
    %c0_i32 = arith.constant 0 : i32
    %c0_i32_0 = arith.constant 0 : i32
    %c0_i32_1 = arith.constant 0 : i32
    return %c0_i32, %c0_i32_0 : i32, i32
  }
  func.func @transform_5(%arg0: i32) -> (i32, i32) {
    %c0_i32 = arith.constant 0 : i32
    %c0_i32_0 = arith.constant 0 : i32
    %c0_i32_1 = arith.constant 0 : i32
    return %c0_i32, %c0_i32_0 : i32, i32
  }
  func.func @transform_6(%arg0: i32) -> (i32, i32) {
    %c0_i32 = arith.constant 0 : i32
    %c0_i32_0 = arith.constant 0 : i32
    %c0_i32_1 = arith.constant 0 : i32
    return %c0_i32, %c0_i32_0 : i32, i32
  }
  func.func @transform_7(%arg0: i32) -> (i32, i32, i32) {
    %c0_i32 = arith.constant 0 : i32
    %c0_i32_0 = arith.constant 0 : i32
    %c0_i32_1 = arith.constant 0 : i32
    return %arg0, %c0_i32, %c0_i32_0 : i32, i32, i32
  }
}

</mosaic_0001>

<llo_original>
// kernel: bamba_attention_decoder_layer.1
$region0: #{bamba_attention_decoder_layer.1}
  #allocation0 [shape = 'u32[]', space=smem, size = 0x4, offset = 0x4, fixed_abs, tag = 'smem constant byte address 0x4 - core index']
  #allocation1 [shape = 'u32[72,128]{1,0:T(1,128)}', space=vmem, size = 0x9000, scoped, tag = 'internal scratch']
  %s0 = inlined_call_operand.vmem [shape: f32[4,8,64], index: 0, kind: input, shape index: {}]
  %s1 = inlined_call_operand.hbm [shape: f32[8,256], index: 1, kind: input, shape index: {}]
  %s2 = inlined_call_operand.vmem [shape: f32[2,64], index: 2, kind: input, shape index: {}]
  %s3 = inlined_call_operand.hbm [shape: bf16[64,128], index: 3, kind: input, shape index: {}]
  %s4 = inlined_call_operand.hbm [shape: bf16[64,64], index: 4, kind: input, shape index: {}]
  %s5 = inlined_call_operand.vmem [shape: bf16[64,256], index: 5, kind: input, shape index: {}]
  %s6 = inlined_call_operand.vmem [shape: bf16[128,64], index: 6, kind: input, shape index: {}]
  %s7 = inlined_call_operand.vmem [shape: f32[4,8,128], index: 7, kind: output, shape index: {}]
  %s8 = sld [smem:[#allocation0]]
  $region73: #{bamba_attention_decoder_layer.1} parent=0
    _
  %s10 = ssub.s32 1, %s8
  %s11 = scalar_select 0, %s10, %s8
  $region1: #{bamba_attention_decoder_layer.1} parent=0
    #allocation2 [shape = 'u8[8192]{0}', space=vmem, size = 0x2000, scoped, tag = 'input window, operand 1, single buffered']
    #allocation3 [shape = 's32[2]{0}', space=sflag, size = 0x8, scoped, tag = 'scoped memory for bamba_attention_decoder_layer.1']
    #allocation4 [shape = 'u8[16384]{0}', space=vmem, size = 0x4000, scoped, tag = 'input window, operand 3, single buffered']
    #allocation5 [shape = 's32[1]{0}', space=sflag, size = 0x4, scoped, tag = 'scoped memory for bamba_attention_decoder_layer.1']
    #allocation6 [shape = 'u8[16384]{0}', space=vmem, size = 0x4000, scoped, tag = 'input window, operand 4, single buffered']
    %12 = vsyncpa [#allocation3], 0
    %13 = vsyncpa [#allocation5], 0
    loop: start=0, step=1, limit=6
    $region2: #{bamba_attention_decoder_layer.1} parent=1 // loop_pre_header
      _
    $region3: #{bamba_attention_decoder_layer.1} parent=1 // loop_header
      %s15 = sphi 0, %s19
      %p16 = scmp.ge.s32.totalorder %s15, 6
      %s25 = sphi 0, %s27
      %s28 = sphi 0, %s25
      %s29 = sphi 0, %s28
      %s45 = sphi 0, %s29
      %s49 = sphi 0, %s49
      %s51 = sphi 0, %s49
      %s52 = sphi 0, %s51
      %s66 = sphi 0, %s52
      %s70 = sphi 0, %s70
      %s72 = sphi 0, %s70
      %s73 = sphi 0, %s72
      %s87 = sphi 0, %s73
      %s91 = sphi 0, %s91
      %s93 = sphi 0, %s91
      %s94 = sphi 0, %s93
      %s108 = sphi 0, %s94
      %s112 = sphi 0, %s112
      %s114 = sphi 0, %s112
      %s115 = sphi 0, %s114
      %s129 = sphi 0, %s115
      %s133 = sphi 0, %s133
      %s135 = sphi 0, %s133
      %s136 = sphi 0, %s135
      %s150 = sphi 0, %s136
      %s154 = sphi 0, %s154
      %s156 = sphi 0, %s154
      %s157 = sphi 0, %s156
      %s171 = sphi 0, %s157
      %s177 = sphi 0, %s179
      %s180 = sphi 0, %s177
      %s181 = sphi 0, %s180
      %s197 = sphi 0, %s181
    $region4: #{bamba_attention_decoder_layer.1} parent=1 // loop_header_branch
      %18 = sbr.rel (%p16) target = $region8
    $region5: #{bamba_attention_decoder_layer.1} parent=1 // loop_body
      %s20 = ssub.s32 %s15, 1
      %s21 = ssub.s32 %s15, 2
      %s22 = sadd.s32 %s15, 1
      %s23 = ssub.s32 %s15, %s22
      %p24 = scmp.eq.s32.totalorder %s23, 0
      %s26 = sadd.s32 %s25, 1
      %s27 = scalar_select %p24, %s25, %s26
      %p30 = pneg %p24
      %p31 = scmp.eq.s32.totalorder %s15, 3
      %p32 = por %p30, %p31
      %p33 = scmp.ne.s32.totalorder %s25, %s28
      %p34 = scmp.eq.s32.totalorder %s15, 0
      %p35 = por %p33, %p34
      %p36 = scmp.ne.s32.totalorder %s25, %s28
      %p37 = scmp.eq.s32.totalorder %s20, 3
      %p38 = por %p36, %p37
      %p39 = scmp.ne.s32.totalorder %s28, %s29
      %p40 = scmp.eq.s32.totalorder %s20, 0
      %p41 = por %p39, %p40
      %p42 = scmp.ne.s32.totalorder %s28, %s29
      %p43 = scmp.eq.s32.totalorder %s21, 3
      %p44 = por %p42, %p43
      %p46 = scmp.ne.s32.totalorder %s29, %s45
      %p47 = scmp.eq.s32.totalorder %s21, 0
      %p48 = por %p46, %p47
      %s50 = sadd.s32 %s49, 1
      %p53 = scmp.eq.s32.totalorder %s15, 3
      %p54 = scmp.ne.s32.totalorder %s49, %s51
      %p55 = scmp.eq.s32.totalorder %s15, 0
      %p56 = por %p54, %p55
      %p57 = scmp.ne.s32.totalorder %s49, %s51
      %p58 = scmp.eq.s32.totalorder %s20, 3
      %p59 = por %p57, %p58
      %p60 = scmp.ne.s32.totalorder %s51, %s52
      %p61 = scmp.eq.s32.totalorder %s20, 0
      %p62 = por %p60, %p61
      %p63 = scmp.ne.s32.totalorder %s51, %s52
      %p64 = scmp.eq.s32.totalorder %s21, 3
      %p65 = por %p63, %p64
      %p67 = scmp.ne.s32.totalorder %s52, %s66
      %p68 = scmp.eq.s32.totalorder %s21, 0
      %p69 = por %p67, %p68
      %s71 = sadd.s32 %s70, 1
      %p74 = scmp.eq.s32.totalorder %s15, 3
      %p75 = scmp.ne.s32.totalorder %s70, %s72
      %p76 = scmp.eq.s32.totalorder %s15, 0
      %p77 = por %p75, %p76
      %p78 = scmp.ne.s32.totalorder %s70, %s72
      %p79 = scmp.eq.s32.totalorder %s20, 3
      %p80 = por %p78, %p79
      %p81 = scmp.ne.s32.totalorder %s72, %s73
      %p82 = scmp.eq.s32.totalorder %s20, 0
      %p83 = por %p81, %p82
      %p84 = scmp.ne.s32.totalorder %s72, %s73
      %p85 = scmp.eq.s32.totalorder %s21, 3
      %p86 = por %p84, %p85
      %p88 = scmp.ne.s32.totalorder %s73, %s87
      %p89 = scmp.eq.s32.totalorder %s21, 0
      %p90 = por %p88, %p89
      %s92 = sadd.s32 %s91, 1
      %p95 = scmp.eq.s32.totalorder %s15, 3
      %p96 = scmp.ne.s32.totalorder %s91, %s93
      %p97 = scmp.eq.s32.totalorder %s15, 0
      %p98 = por %p96, %p97
      %p99 = scmp.ne.s32.totalorder %s91, %s93
      %p100 = scmp.eq.s32.totalorder %s20, 3
      %p101 = por %p99, %p100
      %p102 = scmp.ne.s32.totalorder %s93, %s94
      %p103 = scmp.eq.s32.totalorder %s20, 0
      %p104 = por %p102, %p103
      %p105 = scmp.ne.s32.totalorder %s93, %s94
      %p106 = scmp.eq.s32.totalorder %s21, 3
      %p107 = por %p105, %p106
      %p109 = scmp.ne.s32.totalorder %s94, %s108
      %p110 = scmp.eq.s32.totalorder %s21, 0
      %p111 = por %p109, %p110
      %s113 = sadd.s32 %s112, 1
      %p116 = scmp.eq.s32.totalorder %s15, 3
      %p117 = scmp.ne.s32.totalorder %s112, %s114
      %p118 = scmp.eq.s32.totalorder %s15, 0
      %p119 = por %p117, %p118
      %p120 = scmp.ne.s32.totalorder %s112, %s114
      %p121 = scmp.eq.s32.totalorder %s20, 3
      %p122 = por %p120, %p121
      %p123 = scmp.ne.s32.totalorder %s114, %s115
      %p124 = scmp.eq.s32.totalorder %s20, 0
      %p125 = por %p123, %p124
      %p126 = scmp.ne.s32.totalorder %s114, %s115
      %p127 = scmp.eq.s32.totalorder %s21, 3
      %p128 = por %p126, %p127
      %p130 = scmp.ne.s32.totalorder %s115, %s129
      %p131 = scmp.eq.s32.totalorder %s21, 0
      %p132 = por %p130, %p131
      %s134 = sadd.s32 %s133, 1
      %p137 = scmp.eq.s32.totalorder %s15, 3
      %p138 = scmp.ne.s32.totalorder %s133, %s135
      %p139 = scmp.eq.s32.totalorder %s15, 0
      %p140 = por %p138, %p139
      %p141 = scmp.ne.s32.totalorder %s133, %s135
      %p142 = scmp.eq.s32.totalorder %s20, 3
      %p143 = por %p141, %p142
      %p144 = scmp.ne.s32.totalorder %s135, %s136
      %p145 = scmp.eq.s32.totalorder %s20, 0
      %p146 = por %p144, %p145
      %p147 = scmp.ne.s32.totalorder %s135, %s136
      %p148 = scmp.eq.s32.totalorder %s21, 3
      %p149 = por %p147, %p148
      %p151 = scmp.ne.s32.totalorder %s136, %s150
      %p152 = scmp.eq.s32.totalorder %s21, 0
      %p153 = por %p151, %p152
      %s155 = sadd.s32 %s154, 1
      %p158 = scmp.eq.s32.totalorder %s15, 3
      %p159 = scmp.ne.s32.totalorder %s154, %s156
      %p160 = scmp.eq.s32.totalorder %s15, 0
      %p161 = por %p159, %p160
      %p162 = scmp.ne.s32.totalorder %s154, %s156
      %p163 = scmp.eq.s32.totalorder %s20, 3
      %p164 = por %p162, %p163
      %p165 = scmp.ne.s32.totalorder %s156, %s157
      %p166 = scmp.eq.s32.totalorder %s20, 0
      %p167 = por %p165, %p166
      %p168 = scmp.ne.s32.totalorder %s156, %s157
      %p169 = scmp.eq.s32.totalorder %s21, 3
      %p170 = por %p168, %p169
      %p172 = scmp.ne.s32.totalorder %s157, %s171
      %p173 = scmp.eq.s32.totalorder %s21, 0
      %p174 = por %p172, %p173
      %s175 = ssub.s32 %s15, %s22
      %p176 = scmp.eq.s32.totalorder %s175, 0
      %s178 = sadd.s32 %s177, 1
      %s179 = scalar_select %p176, %s177, %s178
      %p182 = pneg %p176
      %p183 = scmp.eq.s32.totalorder %s15, 3
      %p184 = por %p182, %p183
      %p185 = scmp.ne.s32.totalorder %s177, %s180
      %p186 = scmp.eq.s32.totalorder %s15, 0
      %p187 = por %p185, %p186
      %p188 = scmp.ne.s32.totalorder %s177, %s180
      %p189 = scmp.eq.s32.totalorder %s20, 3
      %p190 = por %p188, %p189
      %p191 = scmp.ne.s32.totalorder %s180, %s181
      %p192 = scmp.eq.s32.totalorder %s20, 0
      %p193 = por %p191, %p192
      %p194 = scmp.ne.s32.totalorder %s180, %s181
      %p195 = scmp.eq.s32.totalorder %s21, 3
      %p196 = por %p194, %p195
      %p198 = scmp.ne.s32.totalorder %s181, %s197
      %p199 = scmp.eq.s32.totalorder %s21, 0
      %p200 = por %p198, %p199
      %p201 = scmp.le.s32.totalorder 1, %s15
      %p202 = scmp.lt.s32.totalorder %s15, 5
      %p203 = pnand %p201, %p202
      %p204 = pneg %p203
      // Predicated region
      $region9: #{bamba_attention_decoder_layer.1} parent=5 // pred_check
        _
      $region10: #{bamba_attention_decoder_layer.1} parent=5 // pred_check_branch
        %206 = sbr.rel (%p203) target = $region12
      $region11: #{bamba_attention_decoder_layer.1} parent=5 // pred_region
        %s207 = ssub.s32 %s15, 1
        // Predicated region
        $region13: #{bamba_attention_decoder_layer.1} parent=11 // pred_check
          %p208 = pneg %p62
        $region14: #{bamba_attention_decoder_layer.1} parent=11 // pred_check_branch
          %210 = sbr.rel (%p208) target = $region16
        $region15: #{bamba_attention_decoder_layer.1} parent=11 // pred_region
          %212 = vsyncadd [#allocation3], 0
          %s214 = sshll.u32 %s1, 4
          %s215 = int_to_ptr.hbm [resolvable:$true] %s214
          %s216 = sshll.u32 [#allocation2], 4
          %s217 = int_to_ptr.vmem [resolvable:$true] %s216
          %219 = dma.hbm_to_vmem [thread:$0]  %s215, 256, %s217, [#allocation3]
        $region16: #{bamba_attention_decoder_layer.1} parent=11 // pred_fallthru
          _
        // Predicated region
        $region17: #{bamba_attention_decoder_layer.1} parent=11 // pred_check
          %p220 = pneg %p83
        $region18: #{bamba_attention_decoder_layer.1} parent=11 // pred_check_branch
          %222 = sbr.rel (%p220) target = $region20
        $region19: #{bamba_attention_decoder_layer.1} parent=11 // pred_region
          _
        $region20: #{bamba_attention_decoder_layer.1} parent=11 // pred_fallthru
          _
        // Predicated region
        $region21: #{bamba_attention_decoder_layer.1} parent=11 // pred_check
          %p223 = pneg %p104
        $region22: #{bamba_attention_decoder_layer.1} parent=11 // pred_check_branch
          %225 = sbr.rel (%p223) target = $region24
        $region23: #{bamba_attention_decoder_layer.1} parent=11 // pred_region
          %227 = vsyncadd [#allocation5], 0
          %s228 = sshll.u32 %s3, 4
          %s229 = int_to_ptr.hbm [resolvable:$true] %s228
          %s230 = sshll.u32 [#allocation4], 4
          %s231 = int_to_ptr.vmem [resolvable:$true] %s230
          %236 = dma.hbm_to_vmem [thread:$0]  %s229, 512, %s231, [#allocation5], 64, 64, 4
        $region24: #{bamba_attention_decoder_layer.1} parent=11 // pred_fallthru
          _
        // Predicated region
        $region25: #{bamba_attention_decoder_layer.1} parent=11 // pred_check
          %p237 = pneg %p125
        $region26: #{bamba_attention_decoder_layer.1} parent=11 // pred_check_branch
          %239 = sbr.rel (%p237) target = $region28
        $region27: #{bamba_attention_decoder_layer.1} parent=11 // pred_region
          %241 = vsyncadd [#allocation5], 0
          %s242 = sshll.u32 %s4, 4
          %s243 = int_to_ptr.hbm [resolvable:$true] %s242
          %s244 = sshll.u32 [#allocation6], 4
          %s245 = int_to_ptr.vmem [resolvable:$true] %s244
          %250 = dma.hbm_to_vmem [thread:$0]  %s243, 512, %s245, [#allocation5], 64, 64, 4
        $region28: #{bamba_attention_decoder_layer.1} parent=11 // pred_fallthru
          _
        // Predicated region
        $region29: #{bamba_attention_decoder_layer.1} parent=11 // pred_check
          %p251 = pneg %p146
        $region30: #{bamba_attention_decoder_layer.1} parent=11 // pred_check_branch
          %253 = sbr.rel (%p251) target = $region32
        $region31: #{bamba_attention_decoder_layer.1} parent=11 // pred_region
          _
        $region32: #{bamba_attention_decoder_layer.1} parent=11 // pred_fallthru
          _
        // Predicated region
        $region33: #{bamba_attention_decoder_layer.1} parent=11 // pred_check
          %p254 = pneg %p167
        $region34: #{bamba_attention_decoder_layer.1} parent=11 // pred_check_branch
          %256 = sbr.rel (%p254) target = $region36
        $region35: #{bamba_attention_decoder_layer.1} parent=11 // pred_region
          _
        $region36: #{bamba_attention_decoder_layer.1} parent=11 // pred_fallthru
          _
      $region12: #{bamba_attention_decoder_layer.1} parent=5 // pred_fallthru
        _
      %p257 = scmp.lt.s32.totalorder %s15, 4
      // Predicated region
      $region37: #{bamba_attention_decoder_layer.1} parent=5 // pred_check
        %p258 = pneg %p257
      $region38: #{bamba_attention_decoder_layer.1} parent=5 // pred_check_branch
        %260 = sbr.rel (%p258) target = $region40
      $region39: #{bamba_attention_decoder_layer.1} parent=5 // pred_region
        // Predicated region
        $region41: #{bamba_attention_decoder_layer.1} parent=39 // pred_check
          %p261 = pneg %p35
        $region42: #{bamba_attention_decoder_layer.1} parent=39 // pred_check_branch
          %263 = sbr.rel (%p261) target = $region44
        $region43: #{bamba_attention_decoder_layer.1} parent=39 // pred_region
          %p264 = scmp.lt.s32.totalorder %s15, 3
          %s265 = scalar_select %p264, %s15, 3
          %s266 = smul.addr %s265, 8
          %s267 = scalar_lea.vmem %s0, %s266
        $region44: #{bamba_attention_decoder_layer.1} parent=39 // pred_fallthru
          _
      $region40: #{bamba_attention_decoder_layer.1} parent=5 // pred_fallthru
        _
      %p268 = scmp.le.s32.totalorder 1, %s15
      %p269 = scmp.lt.s32.totalorder %s15, 5
      %p270 = pnand %p268, %p269
      %p271 = pneg %p270
      // Predicated region
      $region45: #{bamba_attention_decoder_layer.1} parent=5 // pred_check
        _
      $region46: #{bamba_attention_decoder_layer.1} parent=5 // pred_check_branch
        %273 = sbr.rel (%p270) target = $region48
      $region47: #{bamba_attention_decoder_layer.1} parent=5 // pred_region
        %s274 = ssub.s32 %s15, 1
        // Predicated region
        $region49: #{bamba_attention_decoder_layer.1} parent=47 // pred_check
          %p275 = pneg %p62
        $region50: #{bamba_attention_decoder_layer.1} parent=47 // pred_check_branch
          %277 = sbr.rel (%p275) target = $region52
        $region51: #{bamba_attention_decoder_layer.1} parent=47 // pred_region
          %279 = dma.done [#allocation3], 256
        $region52: #{bamba_attention_decoder_layer.1} parent=47 // pred_fallthru
          _
        // Predicated region
        $region53: #{bamba_attention_decoder_layer.1} parent=47 // pred_check
          %p280 = pneg %p104
        $region54: #{bamba_attention_decoder_layer.1} parent=47 // pred_check_branch
          %282 = sbr.rel (%p280) target = $region56
        $region55: #{bamba_attention_decoder_layer.1} parent=47 // pred_region
          %284 = dma.done [#allocation5], 512
        $region56: #{bamba_attention_decoder_layer.1} parent=47 // pred_fallthru
          _
        // Predicated region
        $region57: #{bamba_attention_decoder_layer.1} parent=47 // pred_check
          %p285 = pneg %p125
        $region58: #{bamba_attention_decoder_layer.1} parent=47 // pred_check_branch
          %287 = sbr.rel (%p285) target = $region60
        $region59: #{bamba_attention_decoder_layer.1} parent=47 // pred_region
          %289 = dma.done [#allocation5], 512
        $region60: #{bamba_attention_decoder_layer.1} parent=47 // pred_fallthru
          _
        %p290 = scmp.lt.s32.totalorder %s20, 3
        %s291 = scalar_select %p290, %s20, 3
        %s292 = smul.addr %s291, 8
        %s293 = scalar_lea.vmem %s0, %s292
        %p294 = pneg %p41
        %p295 = pneg %p38
        %p296 = pneg %p62
        %p297 = pneg %p59
        %p298 = pneg %p83
        %p299 = pneg %p80
        %p300 = pneg %p104
        %p301 = pneg %p101
        %p302 = pneg %p125
        %p303 = pneg %p122
        %p304 = pneg %p146
        %p305 = pneg %p143
        %p306 = pneg %p167
        %p307 = pneg %p164
        %p308 = pneg %p193
        %p309 = pneg %p190
        %p310 = scmp.lt.s32.totalorder %s20, 3
        %s311 = scalar_select %p310, %s20, 3
        %s312 = smul.addr %s311, 8
        %s313 = scalar_lea.vmem %s7, %s312
        %p314 = scmp.lt.s32.totalorder %s20, 3
        %s315 = scalar_select %p314, %s20, 3
        %s316 = smul.addr %s315, 8
        %s317 = scalar_lea.vmem %s0, %s316
        %p318 = scmp.lt.s32.totalorder %s20, 3
        %s319 = scalar_select %p318, %s20, 3
        %s320 = smul.addr %s319, 8
        %s321 = scalar_lea.vmem %s7, %s320
        %v323 = vld [vmem:[%s317] sm:$0xff]
        %v324 = vmul.f32 %v323, %v323
        %vm325 = vcmask 523264
        %v326 = vsel %vm325, %v324, 0.0
        %327 = vadd.xlane.f32.xlu0 %v326
        %v328 = vpop.xlane.xlu0 %327
        %v329 = vrcp.pop 64.0
        %v330 = vmul.f32 64.0, %v329
        %v331 = vsub.f32 1.0, %v330
        %v332 = vmul.f32 %v329, %v331
        %v333 = vadd.f32 %v329, %v332
        %vm334 = vweird.f32 %v329
        %v335 = vsel %vm334, %v329, %v333
        %v336 = vmul.f32 %v328, %v335
        %v337 = vadd.f32 %v336, 1e-05
        %v338 = vrsqrt.pop %v337
        %v339 = vmul.f32 %v338, %v337
        %v340 = vmul.f32 %v339, %v338
        %v341 = vmul.f32 0.5, %v340
        %v342 = vsub.f32 1.5, %v341
        %v343 = vmul.f32 %v338, %v342
        %vm344 = vweird.f32 %v337
        %vm345 = vweird.f32 %v338
        %vm346 = vmor %vm344, %vm345
        %v347 = vsel %vm346, %v338, %v343
        %v348 = vmul.f32 %v323, %v347
        %v349 = vld [vmem:[%s2] sm:$0x1]
        %v350 = vperm.slane %v349, 0
        %v351 = vmul.f32 %v348, %v350
        %v352 = vpack.c.bf16 %v351, %v351
        %v353 = vld [vmem:[#allocation4] sm:$0xf]
        %v354 = vld [vmem:[#allocation4 + $0x4] sm:$0xf]
        %v355 = vld [vmem:[#allocation4 + $0x8] sm:$0xf]
        %v356 = vld [vmem:[#allocation4 + $0xc] sm:$0xf]
        %v357 = vld [vmem:[#allocation4 + $0x10] sm:$0xf]
        %v358 = vld [vmem:[#allocation4 + $0x14] sm:$0xf]
        %v359 = vld [vmem:[#allocation4 + $0x18] sm:$0xf]
        %v360 = vld [vmem:[#allocation4 + $0x1c] sm:$0xf]
        %v369 = vunpack.c.l.b16 %v353
        %v370 = vunpack.c.l.b16 %v354
        %v371 = vunpack.c.l.b16 %v355
        %v372 = vunpack.c.l.b16 %v356
        %v373 = vunpack.c.l.b16 %v357
        %v374 = vunpack.c.l.b16 %v358
        %v375 = vunpack.c.l.b16 %v359
        %v376 = vunpack.c.l.b16 %v360
        %v377 = vpack.c.b16 %v370, %v369
        %v378 = vpack.c.b16 %v372, %v371
        %v379 = vpack.c.b16 %v374, %v373
        %v380 = vpack.c.b16 %v376, %v375
        %v386 = vsel %vm325, %v352, 0
        %388 = vmatpush.bf16.msra.mxu0 0
        %389 = vmatpush.bf16.msra.mxu0 0
        %390 = vmatpush.bf16.msra.mxu0 0
        %391 = vmatpush.bf16.msra.mxu0 0
        %392 = vmatpush.bf16.msra.mxu0 %v380
        %393 = vmatpush.bf16.msra.mxu0 %v379
        %394 = vmatpush.bf16.msra.mxu0 %v378
        %395 = vmatpush.bf16.msra.mxu0 %v377
        %396 = vmatmul.bf16.gmra.mxu0 %v386
        %v397 = vpop.f32.mrf.mxu0
        %v398 = vadd.f32 0.0, %v397
        %v399 = vpop.f32.mrf.mxu0
        %400 = vdwg.mxu0
        %v401 = vlaneseq
        %v402 = vand.u32 %v401, 127
        %vm403 = vcmp.lt.s32.totalorder %v402, 0
        %v404 = vsub.s32 0, %v402
        %v405 = vsel %vm403, %v404, %v402
        %v406 = vshrl.u32 %v405, 4
        %v407 = vand.u32 %v405, 15
        %v408 = vsub.s32 0, %v407
        %v409 = vsel %vm403, %v408, %v407
        %vm410 = vcmp.ne.s32.totalorder %v409, 0
        %vm411 = vcmp.lt.s32.totalorder %v409, 0
        %vm412 = vmand %vm411, %vm410
        %v413 = vadd.s32 %v409, 16
        %v414 = vsel %vm412, %v413, %v409
        %vm415 = vcmp.ge.s32.totalorder %v414, 8
        %416 = vrot.lane.b32.xlu0 %v398, 8
        %v417 = vpop.permute.xlu0 %416
        %418 = vrot.lane.b32.xlu0 %v398, 120
        %v419 = vpop.permute.xlu0 %418
        %v420 = vsub.f32 0.0, %v419
        %v421 = vsel %vm415, %v417, %v420
        %v422 = vld [vmem:[#allocation2] sm:$0xff]
        %v423 = vld [vmem:[#allocation2 + $0x8] sm:$0xff]
        %v424 = vmul.f32 %v398, %v422
        %v425 = vmul.f32 %v421, %v423
        %v426 = vadd.f32 %v424, %v425
        %v427 = vlaneseq
        %v428 = vshrl.u32 %v427, 7
        %v429 = vadd.s32 %v428, 8
        %vm430 = vcmp.lt.s32.totalorder %v428, 0
        %v431 = vsub.s32 0, %v428
        %v432 = vsel %vm430, %v431, %v428
        %v433 = vshrl.u32 %v432, 3
        %v434 = vand.u32 %v432, 7
        %v435 = vsub.s32 0, %v434
        %v436 = vsel %vm430, %v435, %v434
        %vm437 = vcmp.lt.s32.totalorder %v429, 0
        %v438 = vsub.s32 0, %v429
        %v439 = vsel %vm437, %v438, %v429
        %v440 = vshrl.u32 %v439, 3
        %v441 = vand.u32 %v439, 7
        %v442 = vsub.s32 0, %v441
        %v443 = vsel %vm437, %v442, %v441
        %vm444 = vcmp.ne.s32.totalorder %v436, 0
        %vm445 = vcmp.ne.s32.totalorder %v443, 0
        %vm446 = vcmp.lt.s32.totalorder %v436, 0
        %vm447 = vcmp.lt.s32.totalorder %v443, 0
        %vm448 = vmand %vm446, %vm444
        %vm449 = vmand %vm447, %vm445
        %v450 = vadd.s32 %v436, 8
        %v451 = vadd.s32 %v443, 8
        %v452 = vsel %vm448, %v450, %v436
        %v453 = vsel %vm449, %v451, %v443
        %vm454 = vcmp.ge.s32.totalorder %v452, %v402
        %vm455 = vcmp.ge.s32.totalorder %v453, %v402
        %457 = vrot.lane.b32.xlu0 %v426, 112
        %v458 = vpop.permute.xlu0 %457
        %v460 = vpack.c.bf16 %v458, %v426
        %v461 = vpack.c.bf16 %v426, %v426
        %463 = vrot.lane.b32.xlu0 %v461, 64
        %v464 = vpop.permute.xlu0 %463
        %vm465 = vcmask 130048
        %v467 = vsel %vm465, %v460, 0
        %v470 = vsel %vm465, %v464, 0
        %472 = vmatpush.bf16.xpose.msra.mxu0 0
        %473 = vmatpush.bf16.xpose.msra.mxu0 0
        %474 = vmatpush.bf16.xpose.msra.mxu0 0
        %475 = vmatpush.bf16.xpose.msra.mxu0 0
        %476 = vmatpush.bf16.xpose.msra.mxu0 0
        %477 = vmatpush.bf16.xpose.msra.mxu0 0
        %478 = vmatpush.bf16.xpose.msra.mxu0 0
        %479 = vmatpush.bf16.xpose.msra.mxu0 %v470
        %480 = vmatmul.bf16.gmra.mxu0 %v467
        %v481 = vpop.f32.mrf.mxu0
        %v482 = vadd.f32 0.0, %v481
        %v483 = vpop.f32.mrf.mxu0
        %v484 = vadd.f32 0.0, %v483
        %485 = vdwg.mxu0
        %v486 = vsel %vm454, %v482, -1e+30
        %v487 = vsel %vm455, %v484, -1e+30
        %vm488 = vcmask 64512
        %v489 = vsel %vm488, %v486, -inf
        %490 = vmax.xlane.f32.xlu0 %v489
        %v491 = vpop.xlane.xlu0 %490
        %v492 = vsel %vm488, %v487, -inf
        %493 = vmax.xlane.f32.xlu0 %v492
        %v494 = vpop.xlane.xlu0 %493
        %v495 = vsub.f32 %v486, %v491
        %v496 = vsub.f32 %v487, %v494
        %v497 = vmul.f32 %v495, 1.442695
        %v498 = vpow.pop %v497
        %v499 = vmul.f32 %v496, 1.442695
        %v500 = vpow.pop %v499
        %v501 = vsel %vm488, %v498, 0.0
        %502 = vadd.xlane.f32.xlu0 %v501
        %v503 = vpop.xlane.xlu0 %502
        %v504 = vsel %vm488, %v500, 0.0
        %505 = vadd.xlane.f32.xlu0 %v504
        %v506 = vpop.xlane.xlu0 %505
        %v507 = vrcp.pop %v503
        %v508 = vrcp.pop %v506
        %v509 = vmul.f32 %v498, %v507
        %v510 = vmul.f32 %v500, %v508
        %v511 = vpack.c.bf16 %v510, %v509
        %512 = vrot.lane.b32.xlu0 %v461, 32
        %v513 = vpop.permute.xlu0 %512
        %v515 = vsel %vm488, %v511, 0
        %vm517 = vcmask 1043456
        %v519 = vsel %vm517, %v513, 0
        %521 = vmatpush.bf16.msra.mxu0 0
        %522 = vmatpush.bf16.msra.mxu0 0
        %523 = vmatpush.bf16.msra.mxu0 0
        %524 = vmatpush.bf16.msra.mxu0 0
        %525 = vmatpush.bf16.msra.mxu0 0
        %526 = vmatpush.bf16.msra.mxu0 0
        %527 = vmatpush.bf16.msra.mxu0 0
        %528 = vmatpush.bf16.msra.mxu0 %v519
        %529 = vmatmul.bf16.gmra.mxu0 %v515
        %v530 = vpop.f32.mrf.mxu0
        %v531 = vadd.f32 0.0, %v530
        %v532 = vpop.f32.mrf.mxu0
        %v533 = vadd.f32 0.0, %v532
        %534 = vdwg.mxu0
        %v535 = vpack.c.bf16 %v531, %v531
        %v536 = vld [vmem:[#allocation6] sm:$0xf]
        %v537 = vld [vmem:[#allocation6 + $0x4] sm:$0xf]
        %v540 = vunpack.c.l.b16 %v536
        %v541 = vunpack.c.l.b16 %v537
        %v542 = vpack.c.b16 %v541, %v540
        %v545 = vsel %vm465, %v535, 0
        %547 = vmatpush.bf16.msra.mxu0 0
        %548 = vmatpush.bf16.msra.mxu0 0
        %549 = vmatpush.bf16.msra.mxu0 0
        %550 = vmatpush.bf16.msra.mxu0 0
        %551 = vmatpush.bf16.msra.mxu0 0
        %552 = vmatpush.bf16.msra.mxu0 0
        %553 = vmatpush.bf16.msra.mxu0 0
        %554 = vmatpush.bf16.msra.mxu0 %v542
        %555 = vmatmul.bf16.gmra.mxu0 %v545
        %v556 = vpop.f32.mrf.mxu0
        %v557 = vadd.f32 0.0, %v556
        %v558 = vpop.f32.mrf.mxu0
        %559 = vdwg.mxu0
        %v560 = vadd.f32 %v323, %v557
        %v561 = vpack.c.bf16 %v533, %v533
        %v562 = vld [vmem:[#allocation6 + $0x8] sm:$0xf]
        %v563 = vld [vmem:[#allocation6 + $0xc] sm:$0xf]
        %v566 = vunpack.c.l.b16 %v562
        %v567 = vunpack.c.l.b16 %v563
        %v568 = vpack.c.b16 %v567, %v566
        %v571 = vsel %vm465, %v561, 0
        %573 = vmatpush.bf16.msra.mxu0 0
        %574 = vmatpush.bf16.msra.mxu0 0
        %575 = vmatpush.bf16.msra.mxu0 0
        %576 = vmatpush.bf16.msra.mxu0 0
        %577 = vmatpush.bf16.msra.mxu0 0
        %578 = vmatpush.bf16.msra.mxu0 0
        %579 = vmatpush.bf16.msra.mxu0 0
        %580 = vmatpush.bf16.msra.mxu0 %v568
        %581 = vmatmul.bf16.gmra.mxu0 %v571
        %v582 = vpop.f32.mrf.mxu0
        %v583 = vadd.f32 0.0, %v582
        %v584 = vpop.f32.mrf.mxu0
        %585 = vdwg.mxu0
        %v586 = vadd.f32 %v560, %v583
        %588 = vrot.lane.b32.xlu0 %v460, 96
        %v589 = vpop.permute.xlu0 %588
        %590 = vrot.lane.b32.xlu0 %v461, 48
        %v591 = vpop.permute.xlu0 %590
        %v593 = vsel %vm465, %v589, 0
        %v596 = vsel %vm465, %v591, 0
        %598 = vmatpush.bf16.xpose.msra.mxu0 0
        %599 = vmatpush.bf16.xpose.msra.mxu0 0
        %600 = vmatpush.bf16.xpose.msra.mxu0 0
        %601 = vmatpush.bf16.xpose.msra.mxu0 0
        %602 = vmatpush.bf16.xpose.msra.mxu0 0
        %603 = vmatpush.bf16.xpose.msra.mxu0 0
        %604 = vmatpush.bf16.xpose.msra.mxu0 0
        %605 = vmatpush.bf16.xpose.msra.mxu0 %v596
        %606 = vmatmul.bf16.gmra.mxu0 %v593
        %v607 = vpop.f32.mrf.mxu0
        %v608 = vadd.f32 0.0, %v607
        %v609 = vpop.f32.mrf.mxu0
        %v610 = vadd.f32 0.0, %v609
        %611 = vdwg.mxu0
        %v612 = vsel %vm454, %v608, -1e+30
        %v613 = vsel %vm455, %v610, -1e+30
        %v614 = vsel %vm488, %v612, -inf
        %615 = vmax.xlane.f32.xlu0 %v614
        %v616 = vpop.xlane.xlu0 %615
        %v617 = vsel %vm488, %v613, -inf
        %618 = vmax.xlane.f32.xlu0 %v617
        %v619 = vpop.xlane.xlu0 %618
        %v620 = vsub.f32 %v612, %v616
        %v621 = vsub.f32 %v613, %v619
        %v622 = vmul.f32 %v620, 1.442695
        %v623 = vpow.pop %v622
        %v624 = vmul.f32 %v621, 1.442695
        %v625 = vpow.pop %v624
        %v626 = vsel %vm488, %v623, 0.0
        %627 = vadd.xlane.f32.xlu0 %v626
        %v628 = vpop.xlane.xlu0 %627
        %v629 = vsel %vm488, %v625, 0.0
        %630 = vadd.xlane.f32.xlu0 %v629
        %v631 = vpop.xlane.xlu0 %630
        %v632 = vrcp.pop %v628
        %v633 = vrcp.pop %v631
        %v634 = vmul.f32 %v623, %v632
        %v635 = vmul.f32 %v625, %v633
        %v636 = vpack.c.bf16 %v635, %v634
        %637 = vrot.lane.b32.xlu0 %v461, 16
        %v638 = vpop.permute.xlu0 %637
        %v640 = vsel %vm488, %v636, 0
        %v643 = vsel %vm517, %v638, 0
        %645 = vmatpush.bf16.msra.mxu0 0
        %646 = vmatpush.bf16.msra.mxu0 0
        %647 = vmatpush.bf16.msra.mxu0 0
        %648 = vmatpush.bf16.msra.mxu0 0
        %649 = vmatpush.bf16.msra.mxu0 0
        %650 = vmatpush.bf16.msra.mxu0 0
        %651 = vmatpush.bf16.msra.mxu0 0
        %652 = vmatpush.bf16.msra.mxu0 %v643
        %653 = vmatmul.bf16.gmra.mxu0 %v640
        %v654 = vpop.f32.mrf.mxu0
        %v655 = vadd.f32 0.0, %v654
        %v656 = vpop.f32.mrf.mxu0
        %v657 = vadd.f32 0.0, %v656
        %658 = vdwg.mxu0
        %v659 = vpack.c.bf16 %v655, %v655
        %v660 = vld [vmem:[#allocation6 + $0x10] sm:$0xf]
        %v661 = vld [vmem:[#allocation6 + $0x14] sm:$0xf]
        %v664 = vunpack.c.l.b16 %v660
        %v665 = vunpack.c.l.b16 %v661
        %v666 = vpack.c.b16 %v665, %v664
        %v669 = vsel %vm465, %v659, 0
        %671 = vmatpush.bf16.msra.mxu0 0
        %672 = vmatpush.bf16.msra.mxu0 0
        %673 = vmatpush.bf16.msra.mxu0 0
        %674 = vmatpush.bf16.msra.mxu0 0
        %675 = vmatpush.bf16.msra.mxu0 0
        %676 = vmatpush.bf16.msra.mxu0 0
        %677 = vmatpush.bf16.msra.mxu0 0
        %678 = vmatpush.bf16.msra.mxu0 %v666
        %679 = vmatmul.bf16.gmra.mxu0 %v669
        %v680 = vpop.f32.mrf.mxu0
        %v681 = vadd.f32 0.0, %v680
        %v682 = vpop.f32.mrf.mxu0
        %683 = vdwg.mxu0
        %v684 = vadd.f32 %v586, %v681
        %v685 = vpack.c.bf16 %v657, %v657
        %v686 = vld [vmem:[#allocation6 + $0x18] sm:$0xf]
        %v687 = vld [vmem:[#allocation6 + $0x1c] sm:$0xf]
        %v690 = vunpack.c.l.b16 %v686
        %v691 = vunpack.c.l.b16 %v687
        %v692 = vpack.c.b16 %v691, %v690
        %v695 = vsel %vm465, %v685, 0
        %697 = vmatpush.bf16.msra.mxu0 0
        %698 = vmatpush.bf16.msra.mxu0 0
        %699 = vmatpush.bf16.msra.mxu0 0
        %700 = vmatpush.bf16.msra.mxu0 0
        %701 = vmatpush.bf16.msra.mxu0 0
        %702 = vmatpush.bf16.msra.mxu0 0
        %703 = vmatpush.bf16.msra.mxu0 0
        %704 = vmatpush.bf16.msra.mxu0 %v692
        %705 = vmatmul.bf16.gmra.mxu0 %v695
        %v706 = vpop.f32.mrf.mxu0
        %v707 = vadd.f32 0.0, %v706
        %v708 = vpop.f32.mrf.mxu0
        %709 = vdwg.mxu0
        %v710 = vadd.f32 %v684, %v707
        %v711 = vmul.f32 %v710, %v710
        %v712 = vsel %vm325, %v711, 0.0
        %713 = vadd.xlane.f32.xlu0 %v712
        %v714 = vpop.xlane.xlu0 %713
        %v715 = vmul.f32 %v714, %v335
        %v716 = vadd.f32 %v715, 1e-05
        %v717 = vrsqrt.pop %v716
        %v718 = vmul.f32 %v717, %v716
        %v719 = vmul.f32 %v718, %v717
        %v720 = vmul.f32 0.5, %v719
        %v721 = vsub.f32 1.5, %v720
        %v722 = vmul.f32 %v717, %v721
        %vm723 = vweird.f32 %v716
        %vm724 = vweird.f32 %v717
        %vm725 = vmor %vm723, %vm724
        %v726 = vsel %vm725, %v717, %v722
        %v727 = vmul.f32 %v710, %v726
        %v728 = vld [vmem:[%s2 + $0x1] sm:$0x1]
        %v729 = vperm.slane %v728, 0
        %v730 = vmul.f32 %v727, %v729
        %v731 = vpack.c.bf16 %v730, %v730
        %v732 = vld [vmem:[%s5] sm:$0xff]
        %v733 = vld [vmem:[%s5 + $0x8] sm:$0xff]
        %v734 = vld [vmem:[%s5 + $0x10] sm:$0xff]
        %v735 = vld [vmem:[%s5 + $0x18] sm:$0xff]
        %v736 = vld [vmem:[%s5 + $0x20] sm:$0xff]
        %v737 = vld [vmem:[%s5 + $0x28] sm:$0xff]
        %v738 = vld [vmem:[%s5 + $0x30] sm:$0xff]
        %v739 = vld [vmem:[%s5 + $0x38] sm:$0xff]
        %v748 = vunpack.c.l.b16 %v732
        %v749 = vunpack.c.h.b16 %v732
        %v750 = vunpack.c.l.b16 %v733
        %v751 = vunpack.c.h.b16 %v733
        %v752 = vunpack.c.l.b16 %v734
        %v753 = vunpack.c.h.b16 %v734
        %v754 = vunpack.c.l.b16 %v735
        %v755 = vunpack.c.h.b16 %v735
        %v756 = vunpack.c.l.b16 %v736
        %v757 = vunpack.c.h.b16 %v736
        %v758 = vunpack.c.l.b16 %v737
        %v759 = vunpack.c.h.b16 %v737
        %v760 = vunpack.c.l.b16 %v738
        %v761 = vunpack.c.h.b16 %v738
        %v762 = vunpack.c.l.b16 %v739
        %v763 = vunpack.c.h.b16 %v739
        %v764 = vpack.c.b16 %v750, %v748
        %v765 = vpack.c.b16 %v751, %v749
        %v766 = vpack.c.b16 %v754, %v752
        %v767 = vpack.c.b16 %v755, %v753
        %v768 = vpack.c.b16 %v758, %v756
        %v769 = vpack.c.b16 %v759, %v757
        %v770 = vpack.c.b16 %v762, %v760
        %v771 = vpack.c.b16 %v763, %v761
        %v781 = vsel %vm325, %v731, 0
        %783 = vmatpush.bf16.msra.mxu0 0
        %784 = vmatpush.bf16.msra.mxu0 0
        %785 = vmatpush.bf16.msra.mxu0 0
        %786 = vmatpush.bf16.msra.mxu0 0
        %787 = vmatpush.bf16.msra.mxu0 %v770
        %788 = vmatpush.bf16.msra.mxu0 %v768
        %789 = vmatpush.bf16.msra.mxu0 %v766
        %790 = vmatpush.bf16.msra.mxu0 %v764
        %791 = vmatmul.bf16.gmra.mxu0 %v781
        %v792 = vpop.f32.mrf.mxu0
        %v793 = vadd.f32 0.0, %v792
        %v794 = vpop.f32.mrf.mxu0
        %795 = vdwg.mxu0
        %796 = vmatpush.bf16.msra.mxu0 0
        %797 = vmatpush.bf16.msra.mxu0 0
        %798 = vmatpush.bf16.msra.mxu0 0
        %799 = vmatpush.bf16.msra.mxu0 0
        %800 = vmatpush.bf16.msra.mxu0 %v771
        %801 = vmatpush.bf16.msra.mxu0 %v769
        %802 = vmatpush.bf16.msra.mxu0 %v767
        %803 = vmatpush.bf16.msra.mxu0 %v765
        %804 = vmatmul.bf16.gmra.mxu0 %v781
        %v805 = vpop.f32.mrf.mxu0
        %v806 = vadd.f32 0.0, %v805
        %v807 = vpop.f32.mrf.mxu0
        %808 = vdwg.mxu0
        %v809 = vxor.u32 %v793, 2147483648
        %v810 = vmul.f32 %v809, 1.442695
        %v811 = vpow.pop %v810
        %v812 = vadd.f32 %v811, 1.0
        %v813 = vrcp.pop %v812
        %v814 = vmul.f32 %v812, %v813
        %v815 = vsub.f32 1.0, %v814
        %v816 = vmul.f32 %v813, %v815
        %v817 = vadd.f32 %v813, %v816
        %vm818 = vweird.f32 %v812
        %vm819 = vweird.f32 %v813
        %vm820 = vmor %vm818, %vm819
        %v821 = vsel %vm820, %v813, %v817
        %v822 = vand.u32 2147483647, %v812
        %vm823 = vcmp.eq.f32.partialorder %v822, 8.507059e+37
        %v824 = vand.u32 %v812, 2147483648
        %v825 = vor.u32 1.1754944e-38, %v824
        %v826 = vsel %vm823, %v825, %v821
        %v827 = vmul.f32 1.0, %v826
        %v828 = vmul.f32 %v793, %v827
        %v829 = vmul.f32 %v828, %v806
        %v830 = vpack.c.bf16 %v829, %v829
        %v831 = vld [vmem:[%s6] sm:$0xf]
        %v832 = vld [vmem:[%s6 + $0x4] sm:$0xf]
        %v833 = vld [vmem:[%s6 + $0x8] sm:$0xf]
        %v834 = vld [vmem:[%s6 + $0xc] sm:$0xf]
        %v835 = vld [vmem:[%s6 + $0x10] sm:$0xf]
        %v836 = vld [vmem:[%s6 + $0x14] sm:$0xf]
        %v837 = vld [vmem:[%s6 + $0x18] sm:$0xf]
        %v838 = vld [vmem:[%s6 + $0x1c] sm:$0xf]
        %v839 = vld [vmem:[%s6 + $0x20] sm:$0xf]
        %v840 = vld [vmem:[%s6 + $0x24] sm:$0xf]
        %v841 = vld [vmem:[%s6 + $0x28] sm:$0xf]
        %v842 = vld [vmem:[%s6 + $0x2c] sm:$0xf]
        %v843 = vld [vmem:[%s6 + $0x30] sm:$0xf]
        %v844 = vld [vmem:[%s6 + $0x34] sm:$0xf]
        %v845 = vld [vmem:[%s6 + $0x38] sm:$0xf]
        %v846 = vld [vmem:[%s6 + $0x3c] sm:$0xf]
        %v863 = vunpack.c.l.b16 %v831
        %v864 = vunpack.c.l.b16 %v832
        %v865 = vunpack.c.l.b16 %v833
        %v866 = vunpack.c.l.b16 %v834
        %v867 = vunpack.c.l.b16 %v835
        %v868 = vunpack.c.l.b16 %v836
        %v869 = vunpack.c.l.b16 %v837
        %v870 = vunpack.c.l.b16 %v838
        %v871 = vunpack.c.l.b16 %v839
        %v872 = vunpack.c.l.b16 %v840
        %v873 = vunpack.c.l.b16 %v841
        %v874 = vunpack.c.l.b16 %v842
        %v875 = vunpack.c.l.b16 %v843
        %v876 = vunpack.c.l.b16 %v844
        %v877 = vunpack.c.l.b16 %v845
        %v878 = vunpack.c.l.b16 %v846
        %v879 = vpack.c.b16 %v864, %v863
        %v880 = vpack.c.b16 %v866, %v865
        %v881 = vpack.c.b16 %v868, %v867
        %v882 = vpack.c.b16 %v870, %v869
        %v883 = vpack.c.b16 %v872, %v871
        %v884 = vpack.c.b16 %v874, %v873
        %v885 = vpack.c.b16 %v876, %v875
        %v886 = vpack.c.b16 %v878, %v877
        %895 = vmatpush.bf16.msra.mxu0 %v886
        %896 = vmatpush.bf16.msra.mxu0 %v885
        %897 = vmatpush.bf16.msra.mxu0 %v884
        %898 = vmatpush.bf16.msra.mxu0 %v883
        %899 = vmatpush.bf16.msra.mxu0 %v882
        %900 = vmatpush.bf16.msra.mxu0 %v881
        %901 = vmatpush.bf16.msra.mxu0 %v880
        %902 = vmatpush.bf16.msra.mxu0 %v879
        %903 = vmatmul.bf16.gmra.mxu0 %v830
        %v904 = vpop.f32.mrf.mxu0
        %v905 = vadd.f32 0.0, %v904
        %v906 = vpop.f32.mrf.mxu0
        %907 = vdwg.mxu0
        %909 = vrot.lane.b32.xlu0 %v710, 64
        %v910 = vpop.permute.xlu0 %909
        %v912 = vsel %vm325, %v905, %v910
        %913 = vst [vmem:[%s321] sm:$0xff] %v912
        %p914 = scmp.lt.s32.totalorder %s20, 3
        %s915 = scalar_select %p914, %s20, 3
        %s916 = smul.addr %s915, 8
        %s917 = scalar_lea.vmem %s7, %s916
        // Predicated region
        $region61: #{bamba_attention_decoder_layer.1} parent=47 // pred_check
          %p918 = pneg %p190
        $region62: #{bamba_attention_decoder_layer.1} parent=47 // pred_check_branch
          %920 = sbr.rel (%p918) target = $region64
        $region63: #{bamba_attention_decoder_layer.1} parent=47 // pred_region
          _
        $region64: #{bamba_attention_decoder_layer.1} parent=47 // pred_fallthru
          _
      $region48: #{bamba_attention_decoder_layer.1} parent=5 // pred_fallthru
        _
      %p921 = scmp.le.s32.totalorder 2, %s15
      // Predicated region
      $region65: #{bamba_attention_decoder_layer.1} parent=5 // pred_check
        %p922 = pneg %p921
      $region66: #{bamba_attention_decoder_layer.1} parent=5 // pred_check_branch
        %924 = sbr.rel (%p922) target = $region68
      $region67: #{bamba_attention_decoder_layer.1} parent=5 // pred_region
        %s925 = ssub.s32 %s15, 2
        // Predicated region
        $region69: #{bamba_attention_decoder_layer.1} parent=67 // pred_check
          %p926 = pneg %p196
        $region70: #{bamba_attention_decoder_layer.1} parent=67 // pred_check_branch
          %928 = sbr.rel (%p926) target = $region72
        $region71: #{bamba_attention_decoder_layer.1} parent=67 // pred_region
          %p929 = scmp.lt.s32.totalorder %s21, 3
          %s930 = scalar_select %p929, %s21, 3
          %s931 = smul.addr %s930, 8
          %s932 = scalar_lea.vmem %s7, %s931
        $region72: #{bamba_attention_decoder_layer.1} parent=67 // pred_fallthru
          _
      $region68: #{bamba_attention_decoder_layer.1} parent=5 // pred_fallthru
        _
    $region6: #{bamba_attention_decoder_layer.1} parent=1 // loop_footer
      %s19 = sadd.s32 1, %s15
    $region7: #{bamba_attention_decoder_layer.1} parent=1 // loop_footer_branch
      %14 = sbr.rel target = $region3
    $region8: #{bamba_attention_decoder_layer.1} parent=1 // loop_exit
      _
    %933 = vsyncpa [#allocation3], 1
    %s934 = scalar_lea.sflag [#allocation3], 1
    %935 = vsyncpa %s934, 1
    %936 = vsyncpa [#allocation5], 1

</llo_original>
